<compile_context>
chip_gen: v6e
topology: v6e:2x2x1
jax: 0.10.0
libtpu: 0.0.40
codegen_flags: <defaults>
</compile_context>

<pallas_src>
import functools

import jax
import jax.numpy as jnp
import numpy as np
from jax.experimental import pallas as pl
from jax.experimental.pallas import tpu as pltpu


def _rotation_sample_kernel(trig_ref, band_ref, img_ref, out_ref, *,
                            H, W, P_real, tn, tk):
    """trig_ref: SMEM (2,) f32 = [cos, sin]; band_ref: SMEM (2, n_j) i32 with
    per-output-tile [k_lo; k_hi]; img_ref: VMEM (nc_tile, K_pad) f32;
    out_ref: VMEM (nc_tile, tn) f32 (also used as the accumulator)."""
    cos_t = trig_ref[0]
    sin_t = trig_ref[1]
    j = pl.program_id(1)

    # ---- per-output-pixel geometry, all on cheap (1, tn) shapes ----
    p_lin = j * tn + jax.lax.broadcasted_iota(jnp.int32, (1, tn), 1)
    p_lin = jnp.minimum(p_lin, P_real - 1)     # padded cols replicate last pixel
    p_f = p_lin.astype(jnp.float32)

    # row/col split without integer vector div (exact with +-1 correction;
    # guarded by P_real < 2**24 in the wrapper).
    h_i = (p_f * (1.0 / float(W))).astype(jnp.int32)
    w_i = p_lin - h_i * W
    h_i = jnp.where(w_i < 0, h_i - 1, h_i)
    h_i = jnp.where(w_i >= W, h_i + 1, h_i)
    w_i = p_lin - h_i * W

    # Normalized output coords in [-1, 1], align_corners=False (PyTorch default).
    x = (2.0 * w_i.astype(jnp.float32) + 1.0) / float(W) - 1.0
    y = (2.0 * h_i.astype(jnp.float32) + 1.0) / float(H) - 1.0

    # affine_grid with theta = [[cos, sin, 0], [-sin, cos, 0]]
    gx = cos_t * x + sin_t * y
    gy = -sin_t * x + cos_t * y

    # Unnormalize to input pixel coords (align_corners=False).
    ix = ((gx + 1.0) * float(W) - 1.0) * 0.5
    iy = ((gy + 1.0) * float(H) - 1.0) * 0.5

    x0f = jnp.floor(ix)
    y0f = jnp.floor(iy)
    fx = ix - x0f
    fy = iy - y0f
    x0 = x0f.astype(jnp.int32)
    y0 = y0f.astype(jnp.int32)
    x1 = x0 + 1
    y1 = y0 + 1

    def masked_w(yc, xc, wgt):
        # Zero padding: out-of-bounds corners get weight 0 (also neutralizes
        # row-wrap aliasing of the linearized index, e.g. xc == W or xc == -1).
        valid = (xc >= 0) & (xc < W) & (yc >= 0) & (yc < H)
        return jnp.where(valid, wgt, 0.0)

    w00 = masked_w(y0, x0, (1.0 - fx) * (1.0 - fy))
    w01 = masked_w(y0, x1, fx * (1.0 - fy))
    w10 = masked_w(y1, x0, (1.0 - fx) * fy)
    w11 = masked_w(y1, x1, fx * fy)

    # Loop-invariant slab pieces, hoisted out of the K loop.
    base = y0 * W + x0                                          # (1, tn)
    q_iota = jax.lax.broadcasted_iota(jnp.int32, (tk, 1), 0)    # (tk, 1)
    d0 = q_iota - base                                          # (tk, tn)

    out_ref[...] = jnp.zeros_like(out_ref)

    # Fused, band-limited K-blocked slab build + matmul.  For input pixel
    # q = start + i the four corner targets are exactly base + {0, 1, W, W+1},
    # so one hoisted diff + 4 scalar compares pick the bilinear weight
    # (distinct constants since W >= 2; invalid corners already carry 0).
    def kstep(k, carry):
        start = pl.multiple_of(k * tk, tk)
        slab = jnp.where(d0 == (0 - start), w00,
               jnp.where(d0 == (1 - start), w01,
               jnp.where(d0 == (W - start), w10,
               jnp.where(d0 == (W + 1 - start), w11, 0.0))))    # (tk, tn)
        a_blk = img_ref[:, pl.ds(start, tk)]                    # (nc_tile, tk)
        out_ref[...] += jnp.dot(a_blk, slab,
                                preferred_element_type=jnp.float32)
        return carry

    k_lo = band_ref[0, j]
    k_hi = band_ref[1, j]
    jax.lax.fori_loop(k_lo, k_hi + 1, kstep, 0)


def _round_up(x, m):
    return ((x + m - 1) // m) * m


def _pick_nc_tile(NC_pad, K_pad):
    """Channel tile (multiple of 8 dividing NC_pad) sized so the double-buffered
    image block stays well inside the default 32 MiB scoped VMEM (and within
    v7x's 64 MiB physical VMEM)."""
    budget = 12 * 1024 * 1024                     # bytes for 2x image block
    cap = max(8, (budget // (2 * K_pad * 4)) // 8 * 8)
    cap = min(cap, 64, NC_pad)
    t = max(8, (cap // 8) * 8)
    while t > 8 and NC_pad % t != 0:
        t -= 8
    return t


def rotation_jitter(image, amount, key):
    """JAX equivalent of RotationJitter(amount)(image) for NCHW float input."""
    N, C, H, W = image.shape
    P = H * W
    NC = N * C
    # float row/col split + distinct corner offsets require these:
    assert W >= 2 and P < (1 << 24)

    # rotation = 2 * amount * (rand(1) - 0.5)
    # TODO(synk): original module uses host-side np.random; here it is a
    # deterministic draw from a jax PRNGKey.
    u = jax.random.uniform(key, (1,), dtype=jnp.float32)[0]
    rotation = 2.0 * amount * (u - 0.5)
    cos_t = jnp.cos(rotation)
    sin_t = jnp.sin(rotation)
    trig = jnp.stack([cos_t, sin_t]).astype(jnp.float32)

    tn = 128                       # output-pixel tile (lane-dense stores)
    tk = 128                       # input-pixel (K) tile; <=256 keeps v5e happy

    P_out = _round_up(P, tn)       # padded output pixels
    K_pad = _round_up(P, tk)       # padded input pixels for the blocked K loop
    n_j = P_out // tn
    n_k = K_pad // tk
    NC_pad = _round_up(NC, 8)
    nc_tile = _pick_nc_tile(NC_pad, K_pad)

    img_flat = image.reshape(NC, P).astype(jnp.float32)
    img_pad = jnp.pad(img_flat, ((0, NC_pad - NC), (0, K_pad - P)))

    # ---- per-output-tile source row band (k_lo, k_hi): computed once in plain
    # XLA and passed to the kernel as SMEM scalars (band-limited K loop). ----
    p = jnp.minimum(jnp.arange(P_out, dtype=jnp.int32), P - 1)
    w_out = (p % W).astype(jnp.float32)
    h_out = (p // W).astype(jnp.float32)
    xn = (2.0 * w_out + 1.0) / W - 1.0
    yn = (2.0 * h_out + 1.0) / H - 1.0
    gy = -sin_t * xn + cos_t * yn
    iy = ((gy + 1.0) * H - 1.0) * 0.5
    y0 = jnp.floor(iy).reshape(n_j, tn)
    row_lo = jnp.clip(jnp.min(y0, axis=1), 0.0, H - 1)
    row_hi = jnp.clip(jnp.max(y0, axis=1) + 1.0, 0.0, H - 1)
    t_lo = row_lo.astype(jnp.int32) * W
    t_hi = row_hi.astype(jnp.int32) * W + (W - 1)
    k_lo = jnp.clip(t_lo // tk, 0, n_k - 1)
    k_hi = jnp.clip(t_hi // tk, 0, n_k - 1)
    band = jnp.stack([k_lo, k_hi]).astype(jnp.int32)            # (2, n_j)

    out_pad = pl.pallas_call(
        functools.partial(_rotation_sample_kernel,
                          H=H, W=W, P_real=P, tn=tn, tk=tk),
        out_shape=jax.ShapeDtypeStruct((NC_pad, P_out), jnp.float32),
        grid=(NC_pad // nc_tile, n_j),
        in_specs=[
            pl.BlockSpec(memory_space=pltpu.MemorySpace.SMEM),   # cos/sin
            pl.BlockSpec(memory_space=pltpu.MemorySpace.SMEM),   # per-tile band
            pl.BlockSpec((nc_tile, K_pad), lambda nc, j: (nc, 0)),
        ],
        out_specs=pl.BlockSpec((nc_tile, tn), lambda nc, j: (nc, j)),
        compiler_params=pltpu.CompilerParams(
            dimension_semantics=("parallel", "parallel")),       # megacore
    )(trig, band, img_pad)

    out_flat = out_pad[:NC, :P]
    return out_flat.reshape(N, C, H, W).astype(image.dtype), rotation


def _ref_rotation(image, rotation):
    """Pure-JAX reference of affine_grid + grid_sample (bilinear, zeros, ac=False)."""
    N, C, H, W = image.shape
    cos_t = jnp.cos(rotation)
    sin_t = jnp.sin(rotation)
    xs = (2.0 * jnp.arange(W, dtype=jnp.float32) + 1.0) / W - 1.0
    ys = (2.0 * jnp.arange(H, dtype=jnp.float32) + 1.0) / H - 1.0
    y, x = jnp.meshgrid(ys, xs, indexing="ij")
    gx = cos_t * x + sin_t * y
    gy = -sin_t * x + cos_t * y
    ix = ((gx + 1.0) * W - 1.0) * 0.5
    iy = ((gy + 1.0) * H - 1.0) * 0.5
    x0 = jnp.floor(ix).astype(jnp.int32)
    y0 = jnp.floor(iy).astype(jnp.int32)
    x1, y1 = x0 + 1, y0 + 1
    fx = ix - x0
    fy = iy - y0

    def gather(yc, xc):
        valid = (yc >= 0) & (yc < H) & (xc >= 0) & (xc < W)
        ycc = jnp.clip(yc, 0, H - 1)
        xcc = jnp.clip(xc, 0, W - 1)
        v = image[:, :, ycc, xcc]
        return jnp.where(valid, v, 0.0)

    return (gather(y0, x0) * (1 - fx) * (1 - fy)
            + gather(y0, x1) * fx * (1 - fy)
            + gather(y1, x0) * (1 - fx) * fy
            + gather(y1, x1) * fx * fy)


if __name__ == "__main__":
    key = jax.random.PRNGKey(0)
    k_img, k_rot = jax.random.split(key)

    N, C, H, W = 2, 4, 16, 16
    image = jax.random.normal(k_img, (N, C, H, W), dtype=jnp.float32)
    amount = 0.3  # max rotation jitter in radians

    out, rotation = rotation_jitter(image, amount, k_rot)
    out = jax.block_until_ready(out)

    ref = _ref_rotation(image, rotation)
    np.testing.assert_allclose(np.asarray(out), np.asarray(ref), rtol=1e-4, atol=1e-4)

    print("KERNEL_OK")
</pallas_src>

<mosaic_0001>
module attributes {stable_mosaic.version = 11 : i64} {
  func.func @_rotation_sample_kernel(%arg0: i32, %arg1: i32, %arg2: memref<2xf32, #tpu.memory_space<smem>>, %arg3: memref<2x2xi32, #tpu.memory_space<smem>>, %arg4: memref<8x256xf32, #tpu.memory_space<vmem>>, %arg5: memref<8x128xf32, #tpu.memory_space<vmem>>) attributes {dimension_semantics = [#tpu.dimension_semantics<parallel>, #tpu.dimension_semantics<parallel>], iteration_bounds = array<i64: 1, 2>, scalar_prefetch = 0 : i64, scratch_operands = 0 : i64, tpu.core_type = #tpu.core_type<tc>, window_params = [{transform_indices = @transform_0, window_bounds = array<i64: 2>}, {transform_indices = @transform_1, window_bounds = array<i64: 2, 2>}, {transform_indices = @transform_2, window_bounds = array<i64: 8, 256>}, {transform_indices = @transform_3, window_bounds = array<i64: 8, 128>}]} {
    %c0 = arith.constant 0 : index
    %0 = memref.load %arg2[%c0] : memref<2xf32, #tpu.memory_space<smem>>
    %c1 = arith.constant 1 : index
    %1 = memref.load %arg2[%c1] : memref<2xf32, #tpu.memory_space<smem>>
    %c128_i32 = arith.constant 128 : i32
    %2 = arith.muli %arg1, %c128_i32 : i32
    %3 = tpu.iota {dimensions = array<i32: 1>} : vector<1x128xi32>
    %4 = vector.broadcast %2 : i32 to vector<1x128xi32>
    %5 = arith.addi %4, %3 : vector<1x128xi32>
    %c255_i32 = arith.constant 255 : i32
    %6 = vector.broadcast %c255_i32 : i32 to vector<1x128xi32>
    %7 = arith.minsi %5, %6 : vector<1x128xi32>
    %8 = arith.sitofp %7 : vector<1x128xi32> to vector<1x128xf32>
    %cst = arith.constant 6.250000e-02 : f32
    %9 = vector.broadcast %cst : f32 to vector<1x128xf32>
    %10 = arith.mulf %8, %9 : vector<1x128xf32>
    %11 = arith.fptosi %10 : vector<1x128xf32> to vector<1x128xi32>
    %c16_i32 = arith.constant 16 : i32
    %12 = vector.broadcast %c16_i32 : i32 to vector<1x128xi32>
    %13 = arith.muli %11, %12 : vector<1x128xi32>
    %14 = arith.subi %7, %13 : vector<1x128xi32>
    %c0_i32 = arith.constant 0 : i32
    %15 = vector.broadcast %c0_i32 : i32 to vector<1x128xi32>
    %16 = arith.cmpi slt, %14, %15 : vector<1x128xi32>
    %c1_i32 = arith.constant 1 : i32
    %17 = vector.broadcast %c1_i32 : i32 to vector<1x128xi32>
    %18 = arith.subi %11, %17 : vector<1x128xi32>
    %19 = arith.select %16, %18, %11 : vector<1x128xi1>, vector<1x128xi32>
    %c16_i32_0 = arith.constant 16 : i32
    %20 = vector.broadcast %c16_i32_0 : i32 to vector<1x128xi32>
    %21 = arith.cmpi sge, %14, %20 : vector<1x128xi32>
    %c1_i32_1 = arith.constant 1 : i32
    %22 = vector.broadcast %c1_i32_1 : i32 to vector<1x128xi32>
    %23 = arith.addi %19, %22 : vector<1x128xi32>
    %24 = arith.select %21, %23, %19 : vector<1x128xi1>, vector<1x128xi32>
    %c16_i32_2 = arith.constant 16 : i32
    %25 = vector.broadcast %c16_i32_2 : i32 to vector<1x128xi32>
    %26 = arith.muli %24, %25 : vector<1x128xi32>
    %27 = arith.subi %7, %26 : vector<1x128xi32>
    %28 = arith.sitofp %27 : vector<1x128xi32> to vector<1x128xf32>
    %cst_3 = arith.constant 2.000000e+00 : f32
    %29 = vector.broadcast %cst_3 : f32 to vector<1x128xf32>
    %30 = arith.mulf %29, %28 : vector<1x128xf32>
    %cst_4 = arith.constant 1.000000e+00 : f32
    %31 = vector.broadcast %cst_4 : f32 to vector<1x128xf32>
    %32 = arith.addf %30, %31 : vector<1x128xf32>
    %cst_5 = arith.constant 1.600000e+01 : f32
    %33 = vector.broadcast %cst_5 : f32 to vector<1x128xf32>
    %34 = arith.divf %32, %33 : vector<1x128xf32>
    %cst_6 = arith.constant 1.000000e+00 : f32
    %35 = vector.broadcast %cst_6 : f32 to vector<1x128xf32>
    %36 = arith.subf %34, %35 : vector<1x128xf32>
    %37 = arith.sitofp %24 : vector<1x128xi32> to vector<1x128xf32>
    %cst_7 = arith.constant 2.000000e+00 : f32
    %38 = vector.broadcast %cst_7 : f32 to vector<1x128xf32>
    %39 = arith.mulf %38, %37 : vector<1x128xf32>
    %cst_8 = arith.constant 1.000000e+00 : f32
    %40 = vector.broadcast %cst_8 : f32 to vector<1x128xf32>
    %41 = arith.addf %39, %40 : vector<1x128xf32>
    %cst_9 = arith.constant 1.600000e+01 : f32
    %42 = vector.broadcast %cst_9 : f32 to vector<1x128xf32>
    %43 = arith.divf %41, %42 : vector<1x128xf32>
    %cst_10 = arith.constant 1.000000e+00 : f32
    %44 = vector.broadcast %cst_10 : f32 to vector<1x128xf32>
    %45 = arith.subf %43, %44 : vector<1x128xf32>
    %46 = vector.broadcast %0 : f32 to vector<1x128xf32>
    %47 = arith.mulf %46, %36 : vector<1x128xf32>
    %48 = vector.broadcast %1 : f32 to vector<1x128xf32>
    %49 = arith.mulf %48, %45 : vector<1x128xf32>
    %50 = arith.addf %47, %49 : vector<1x128xf32>
    %cst_11 = arith.constant 0.000000e+00 : f32
    %51 = arith.subf %cst_11, %1 : f32
    %52 = vector.broadcast %51 : f32 to vector<1x128xf32>
    %53 = arith.mulf %52, %36 : vector<1x128xf32>
    %54 = vector.broadcast %0 : f32 to vector<1x128xf32>
    %55 = arith.mulf %54, %45 : vector<1x128xf32>
    %56 = arith.addf %53, %55 : vector<1x128xf32>
    %cst_12 = arith.constant 1.000000e+00 : f32
    %57 = vector.broadcast %cst_12 : f32 to vector<1x128xf32>
    %58 = arith.addf %50, %57 : vector<1x128xf32>
    %cst_13 = arith.constant 1.600000e+01 : f32
    %59 = vector.broadcast %cst_13 : f32 to vector<1x128xf32>
    %60 = arith.mulf %58, %59 : vector<1x128xf32>
    %cst_14 = arith.constant 1.000000e+00 : f32
    %61 = vector.broadcast %cst_14 : f32 to vector<1x128xf32>
    %62 = arith.subf %60, %61 : vector<1x128xf32>
    %cst_15 = arith.constant 5.000000e-01 : f32
    %63 = vector.broadcast %cst_15 : f32 to vector<1x128xf32>
    %64 = arith.mulf %62, %63 : vector<1x128xf32>
    %cst_16 = arith.constant 1.000000e+00 : f32
    %65 = vector.broadcast %cst_16 : f32 to vector<1x128xf32>
    %66 = arith.addf %56, %65 : vector<1x128xf32>
    %cst_17 = arith.constant 1.600000e+01 : f32
    %67 = vector.broadcast %cst_17 : f32 to vector<1x128xf32>
    %68 = arith.mulf %66, %67 : vector<1x128xf32>
    %cst_18 = arith.constant 1.000000e+00 : f32
    %69 = vector.broadcast %cst_18 : f32 to vector<1x128xf32>
    %70 = arith.subf %68, %69 : vector<1x128xf32>
    %cst_19 = arith.constant 5.000000e-01 : f32
    %71 = vector.broadcast %cst_19 : f32 to vector<1x128xf32>
    %72 = arith.mulf %70, %71 : vector<1x128xf32>
    %73 = math.floor %64 : vector<1x128xf32>
    %74 = math.floor %72 : vector<1x128xf32>
    %75 = arith.subf %64, %73 : vector<1x128xf32>
    %76 = arith.subf %72, %74 : vector<1x128xf32>
    %77 = arith.fptosi %73 : vector<1x128xf32> to vector<1x128xi32>
    %78 = arith.fptosi %74 : vector<1x128xf32> to vector<1x128xi32>
    %c1_i32_20 = arith.constant 1 : i32
    %79 = vector.broadcast %c1_i32_20 : i32 to vector<1x128xi32>
    %80 = arith.addi %77, %79 : vector<1x128xi32>
    %c1_i32_21 = arith.constant 1 : i32
    %81 = vector.broadcast %c1_i32_21 : i32 to vector<1x128xi32>
    %82 = arith.addi %78, %81 : vector<1x128xi32>
    %cst_22 = arith.constant 1.000000e+00 : f32
    %83 = vector.broadcast %cst_22 : f32 to vector<1x128xf32>
    %84 = arith.subf %83, %75 : vector<1x128xf32>
    %cst_23 = arith.constant 1.000000e+00 : f32
    %85 = vector.broadcast %cst_23 : f32 to vector<1x128xf32>
    %86 = arith.subf %85, %76 : vector<1x128xf32>
    %87 = arith.mulf %84, %86 : vector<1x128xf32>
    %c0_i32_24 = arith.constant 0 : i32
    %88 = vector.broadcast %c0_i32_24 : i32 to vector<1x128xi32>
    %89 = arith.cmpi sge, %77, %88 : vector<1x128xi32>
    %c16_i32_25 = arith.constant 16 : i32
    %90 = vector.broadcast %c16_i32_25 : i32 to vector<1x128xi32>
    %91 = arith.cmpi slt, %77, %90 : vector<1x128xi32>
    %92 = arith.andi %89, %91 : vector<1x128xi1>
    %c0_i32_26 = arith.constant 0 : i32
    %93 = vector.broadcast %c0_i32_26 : i32 to vector<1x128xi32>
    %94 = arith.cmpi sge, %78, %93 : vector<1x128xi32>
    %95 = arith.andi %92, %94 : vector<1x128xi1>
    %c16_i32_27 = arith.constant 16 : i32
    %96 = vector.broadcast %c16_i32_27 : i32 to vector<1x128xi32>
    %97 = arith.cmpi slt, %78, %96 : vector<1x128xi32>
    %98 = arith.andi %95, %97 : vector<1x128xi1>
    %cst_28 = arith.constant 0.000000e+00 : f32
    %99 = vector.broadcast %cst_28 : f32 to vector<1x128xf32>
    %100 = arith.select %98, %87, %99 : vector<1x128xi1>, vector<1x128xf32>
    %cst_29 = arith.constant 1.000000e+00 : f32
    %101 = vector.broadcast %cst_29 : f32 to vector<1x128xf32>
    %102 = arith.subf %101, %76 : vector<1x128xf32>
    %103 = arith.mulf %75, %102 : vector<1x128xf32>
    %c0_i32_30 = arith.constant 0 : i32
    %104 = vector.broadcast %c0_i32_30 : i32 to vector<1x128xi32>
    %105 = arith.cmpi sge, %80, %104 : vector<1x128xi32>
    %c16_i32_31 = arith.constant 16 : i32
    %106 = vector.broadcast %c16_i32_31 : i32 to vector<1x128xi32>
    %107 = arith.cmpi slt, %80, %106 : vector<1x128xi32>
    %108 = arith.andi %105, %107 : vector<1x128xi1>
    %c0_i32_32 = arith.constant 0 : i32
    %109 = vector.broadcast %c0_i32_32 : i32 to vector<1x128xi32>
    %110 = arith.cmpi sge, %78, %109 : vector<1x128xi32>
    %111 = arith.andi %108, %110 : vector<1x128xi1>
    %c16_i32_33 = arith.constant 16 : i32
    %112 = vector.broadcast %c16_i32_33 : i32 to vector<1x128xi32>
    %113 = arith.cmpi slt, %78, %112 : vector<1x128xi32>
    %114 = arith.andi %111, %113 : vector<1x128xi1>
    %cst_34 = arith.constant 0.000000e+00 : f32
    %115 = vector.broadcast %cst_34 : f32 to vector<1x128xf32>
    %116 = arith.select %114, %103, %115 : vector<1x128xi1>, vector<1x128xf32>
    %cst_35 = arith.constant 1.000000e+00 : f32
    %117 = vector.broadcast %cst_35 : f32 to vector<1x128xf32>
    %118 = arith.subf %117, %75 : vector<1x128xf32>
    %119 = arith.mulf %118, %76 : vector<1x128xf32>
    %c0_i32_36 = arith.constant 0 : i32
    %120 = vector.broadcast %c0_i32_36 : i32 to vector<1x128xi32>
    %121 = arith.cmpi sge, %77, %120 : vector<1x128xi32>
    %c16_i32_37 = arith.constant 16 : i32
    %122 = vector.broadcast %c16_i32_37 : i32 to vector<1x128xi32>
    %123 = arith.cmpi slt, %77, %122 : vector<1x128xi32>
    %124 = arith.andi %121, %123 : vector<1x128xi1>
    %c0_i32_38 = arith.constant 0 : i32
    %125 = vector.broadcast %c0_i32_38 : i32 to vector<1x128xi32>
    %126 = arith.cmpi sge, %82, %125 : vector<1x128xi32>
    %127 = arith.andi %124, %126 : vector<1x128xi1>
    %c16_i32_39 = arith.constant 16 : i32
    %128 = vector.broadcast %c16_i32_39 : i32 to vector<1x128xi32>
    %129 = arith.cmpi slt, %82, %128 : vector<1x128xi32>
    %130 = arith.andi %127, %129 : vector<1x128xi1>
    %cst_40 = arith.constant 0.000000e+00 : f32
    %131 = vector.broadcast %cst_40 : f32 to vector<1x128xf32>
    %132 = arith.select %130, %119, %131 : vector<1x128xi1>, vector<1x128xf32>
    %133 = arith.mulf %75, %76 : vector<1x128xf32>
    %c0_i32_41 = arith.constant 0 : i32
    %134 = vector.broadcast %c0_i32_41 : i32 to vector<1x128xi32>
    %135 = arith.cmpi sge, %80, %134 : vector<1x128xi32>
    %c16_i32_42 = arith.constant 16 : i32
    %136 = vector.broadcast %c16_i32_42 : i32 to vector<1x128xi32>
    %137 = arith.cmpi slt, %80, %136 : vector<1x128xi32>
    %138 = arith.andi %135, %137 : vector<1x128xi1>
    %c0_i32_43 = arith.constant 0 : i32
    %139 = vector.broadcast %c0_i32_43 : i32 to vector<1x128xi32>
    %140 = arith.cmpi sge, %82, %139 : vector<1x128xi32>
    %141 = arith.andi %138, %140 : vector<1x128xi1>
    %c16_i32_44 = arith.constant 16 : i32
    %142 = vector.broadcast %c16_i32_44 : i32 to vector<1x128xi32>
    %143 = arith.cmpi slt, %82, %142 : vector<1x128xi32>
    %144 = arith.andi %141, %143 : vector<1x128xi1>
    %cst_45 = arith.constant 0.000000e+00 : f32
    %145 = vector.broadcast %cst_45 : f32 to vector<1x128xf32>
    %146 = arith.select %144, %133, %145 : vector<1x128xi1>, vector<1x128xf32>
    %c16_i32_46 = arith.constant 16 : i32
    %147 = vector.broadcast %c16_i32_46 : i32 to vector<1x128xi32>
    %148 = arith.muli %78, %147 : vector<1x128xi32>
    %149 = arith.addi %148, %77 : vector<1x128xi32>
    %150 = tpu.iota {dimensions = array<i32: 0>} : vector<128x1xi32>
    %151 = vector.broadcast %150 : vector<128x1xi32> to vector<128x128xi32>
    %152 = vector.broadcast %149 : vector<1x128xi32> to vector<128x128xi32>
    %153 = arith.subi %151, %152 : vector<128x128xi32>
    %cst_47 = arith.constant 0.000000e+00 : f32
    %154 = vector.broadcast %cst_47 : f32 to vector<8x128xf32>
    %c0_48 = arith.constant 0 : index
    %c0_49 = arith.constant 0 : index
    %155 = vector.load %arg5[%c0_48, %c0_49] : memref<8x128xf32, #tpu.memory_space<vmem>>, vector<8x128xf32>
    tpu.vector_store %arg5[%c0_48, %c0_49], %154 {strides = array<i32>} : memref<8x128xf32, #tpu.memory_space<vmem>>, vector<8x128xf32>,
    %c0_50 = arith.constant 0 : index
    %156 = arith.index_cast %arg1 : i32 to index
    %157 = memref.load %arg3[%c0_50, %156] : memref<2x2xi32, #tpu.memory_space<smem>>
    %c1_51 = arith.constant 1 : index
    %158 = arith.index_cast %arg1 : i32 to index
    %159 = memref.load %arg3[%c1_51, %158] : memref<2x2xi32, #tpu.memory_space<smem>>
    %c1_i32_52 = arith.constant 1 : i32
    %160 = arith.addi %159, %c1_i32_52 : i32
    %c0_i32_53 = arith.constant 0 : i32
    %161 = arith.subi %160, %157 : i32
    %162 = arith.addi %157, %161 : i32
    %c1_i32_54 = arith.constant 1 : i32
    scf.for %arg6 = %157 to %162 step %c1_i32_54  : i32 {
      %c128_i32_55 = arith.constant 128 : i32
      %163 = arith.muli %arg6, %c128_i32_55 : i32
      %164 = tpu.assume_multiple %163, 128 : i32
      %c0_i32_56 = arith.constant 0 : i32
      %165 = arith.subi %c0_i32_56, %164 : i32
      %166 = vector.broadcast %165 : i32 to vector<128x128xi32>
      %167 = arith.cmpi eq, %153, %166 : vector<128x128xi32>
      %c1_i32_57 = arith.constant 1 : i32
      %168 = arith.subi %c1_i32_57, %164 : i32
      %169 = vector.broadcast %168 : i32 to vector<128x128xi32>
      %170 = arith.cmpi eq, %153, %169 : vector<128x128xi32>
      %c16_i32_58 = arith.constant 16 : i32
      %171 = arith.subi %c16_i32_58, %164 : i32
      %172 = vector.broadcast %171 : i32 to vector<128x128xi32>
      %173 = arith.cmpi eq, %153, %172 : vector<128x128xi32>
      %c17_i32 = arith.constant 17 : i32
      %174 = arith.subi %c17_i32, %164 : i32
      %175 = vector.broadcast %174 : i32 to vector<128x128xi32>
      %176 = arith.cmpi eq, %153, %175 : vector<128x128xi32>
      %cst_59 = arith.constant 0.000000e+00 : f32
      %177 = vector.shape_cast %146 : vector<1x128xf32> to vector<1x128xf32>
      %178 = vector.broadcast %177 : vector<1x128xf32> to vector<128x128xf32>
      %179 = vector.broadcast %cst_59 : f32 to vector<128x128xf32>
      %180 = arith.select %176, %178, %179 : vector<128x128xi1>, vector<128x128xf32>
      %181 = vector.shape_cast %132 : vector<1x128xf32> to vector<1x128xf32>
      %182 = vector.broadcast %181 : vector<1x128xf32> to vector<128x128xf32>
      %183 = arith.select %173, %182, %180 : vector<128x128xi1>, vector<128x128xf32>
      %184 = vector.shape_cast %116 : vector<1x128xf32> to vector<1x128xf32>
      %185 = vector.broadcast %184 : vector<1x128xf32> to vector<128x128xf32>
      %186 = arith.select %170, %185, %183 : vector<128x128xi1>, vector<128x128xf32>
      %187 = vector.shape_cast %100 : vector<1x128xf32> to vector<1x128xf32>
      %188 = vector.broadcast %187 : vector<1x128xf32> to vector<128x128xf32>
      %189 = arith.select %167, %188, %186 : vector<128x128xi1>, vector<128x128xf32>
      %c0_60 = arith.constant 0 : index
      %190 = arith.index_cast %164 : i32 to index
      %191 = vector.load %arg4[%c0_60, %190] : memref<8x256xf32, #tpu.memory_space<vmem>>, vector<8x128xf32>
      %c0_61 = arith.constant 0 : index
      %c0_62 = arith.constant 0 : index
      %192 = vector.load %arg5[%c0_61, %c0_62] : memref<8x128xf32, #tpu.memory_space<vmem>>, vector<8x128xf32>
      %cst_63 = arith.constant dense<0.000000e+00> : vector<8x128xf32>
      %193 = tpu.matmul %191, %189, %cst_63 {dimension_numbers = #tpu.dot_dimension_numbers<[1], [0], [0], [1], [0, 0, 1, 1], [], []>} : vector<8x128xf32>, vector<128x128xf32>, vector<8x128xf32> -> vector<8x128xf32>
      %194 = arith.addf %192, %193 : vector<8x128xf32>
      %c0_64 = arith.constant 0 : index
      %c0_65 = arith.constant 0 : index
      %195 = vector.load %arg5[%c0_64, %c0_65] : memref<8x128xf32, #tpu.memory_space<vmem>>, vector<8x128xf32>
      tpu.vector_store %arg5[%c0_64, %c0_65], %194 {strides = array<i32>} : memref<8x128xf32, #tpu.memory_space<vmem>>, vector<8x128xf32>,
    }
    return
  }
  func.func @transform_0(%arg0: i32, %arg1: i32) -> i32 {
    %c0_i32 = arith.constant 0 : i32
    %c0_i32_0 = arith.constant 0 : i32
    return %c0_i32 : i32
  }
  func.func @transform_1(%arg0: i32, %arg1: i32) -> (i32, i32) {
    %c0_i32 = arith.constant 0 : i32
    %c0_i32_0 = arith.constant 0 : i32
    %c0_i32_1 = arith.constant 0 : i32
    return %c0_i32, %c0_i32_0 : i32, i32
  }
  func.func @transform_2(%arg0: i32, %arg1: i32) -> (i32, i32) {
    %c0_i32 = arith.constant 0 : i32
    %c0_i32_0 = arith.constant 0 : i32
    return %arg0, %c0_i32 : i32, i32
  }
  func.func @transform_3(%arg0: i32, %arg1: i32) -> (i32, i32) {
    %c0_i32 = arith.constant 0 : i32
    return %arg0, %arg1 : i32, i32
  }
}

</mosaic_0001>

<llo_original>
// kernel: tpu_custom_call.1
$region0: #{tpu_custom_call.1}
  #allocation0 [shape = 'u32[]', space=smem, size = 0x4, offset = 0x4, fixed_abs, tag = 'smem constant byte address 0x4 - core index']
  #allocation1 [shape = 'u32[144,128]{1,0:T(1,128)}', space=vmem, size = 0x12000, scoped, tag = 'internal scratch']
  %s0 = inlined_call_operand.hbm [shape: f32[2], index: 0, kind: input, shape index: {}]
  %s1 = inlined_call_operand.hbm [shape: s32[2,2], index: 1, kind: input, shape index: {}]
  %s2 = inlined_call_operand.hbm [shape: f32[8,256], index: 2, kind: input, shape index: {}]
  %s3 = inlined_call_operand.hbm [shape: f32[8,256], index: 3, kind: output, shape index: {}]
  %s4 = sld [smem:[#allocation0]]
  $region64: #{tpu_custom_call.1} parent=0
    _
  %s6 = ssub.s32 1, %s4
  %s7 = scalar_select 0, %s6, %s4
  $region1: #{tpu_custom_call.1} parent=0
    #allocation2 [shape = 'u8[512]{0}', space=smem, size = 0x200, scoped, tag = 'input window, operand 0, single buffered']
    #allocation3 [shape = 's32[2]{0}', space=sflag, size = 0x8, scoped, tag = 'scoped memory for tpu_custom_call.1']
    #allocation4 [shape = 's32[2]{0}', space=sflag, size = 0x8, scoped, tag = 'scoped memory for tpu_custom_call.1']
    #allocation5 [shape = 's32[2]{0}', space=sflag, size = 0x8, scoped, tag = 'scoped memory for tpu_custom_call.1']
    #allocation6 [shape = 'u8[1024]{0}', space=smem, size = 0x400, scoped, tag = 'input window, operand 1, single buffered']
    #allocation7 [shape = 's32[1]{0}', space=sflag, size = 0x4, scoped, tag = 'scoped memory for tpu_custom_call.1']
    #allocation8 [shape = 'u8[8192]{0}', space=vmem, size = 0x2000, scoped, tag = 'input window, operand 2, single buffered']
    #allocation9 [shape = 'u8[8192]{0}', space=vmem, size = 0x2000, scoped, tag = 'output window, operand 0']
    %8 = vsyncpa [#allocation5], 0
    %9 = vsyncpa [#allocation7], 0
    %10 = vsyncpa [#allocation3], 0
    %11 = vsyncpa [#allocation4], 0
    %s12 = scalar_lea.sflag [#allocation4], 1
    %13 = vsyncpa %s12, 0
    loop: start=0, step=1, limit=4
    $region2: #{tpu_custom_call.1} parent=1 // loop_pre_header
      _
    $region3: #{tpu_custom_call.1} parent=1 // loop_header
      %s15 = sphi 0, %s19
      %p16 = scmp.ge.s32.totalorder %s15, 4
      %s22 = sphi 0, %s34
      %s23 = sphi 0, %s30
      %s24 = sphi 0, %s22
      %s25 = sphi 0, %s23
      %s26 = sphi 0, %s24
      %s27 = sphi 0, %s25
      %s35 = sphi 0, %s35
      %s37 = sphi 0, %s35
      %s38 = sphi 0, %s37
      %s52 = sphi 0, %s38
      %s56 = sphi 0, %s56
      %s58 = sphi 0, %s56
      %s59 = sphi 0, %s58
      %s73 = sphi 0, %s59
      %s79 = sphi 0, %s81
      %s82 = sphi 0, %s79
      %s83 = sphi 0, %s82
      %s99 = sphi 0, %s83
      %s107 = sphi 0, %s109
      %s110 = sphi 0, %s107
      %s111 = sphi 0, %s110
      %s127 = sphi 0, %s111
    $region4: #{tpu_custom_call.1} parent=1 // loop_header_branch
      %18 = sbr.rel (%p16) target = $region8
    $region5: #{tpu_custom_call.1} parent=1 // loop_body
      %s20 = ssub.s32 %s15, 1
      %s21 = ssub.s32 %s15, 2
      %s28 = sadd.s32 1, %s23
      %p29 = scmp.ge.s32.totalorder %s28, 2
      %s30 = scalar_select %p29, 0, %s28
      %s31 = sadd.s32 1, %s22
      %s32 = scalar_select %p29, %s31, %s22
      %p33 = scmp.ge.s32.totalorder %s32, 1
      %s34 = scalar_select %p33, 0, %s32
      %s36 = sadd.s32 %s35, 1
      %p39 = scmp.eq.s32.totalorder %s15, 1
      %p40 = scmp.ne.s32.totalorder %s35, %s37
      %p41 = scmp.eq.s32.totalorder %s15, 0
      %p42 = por %p40, %p41
      %p43 = scmp.ne.s32.totalorder %s35, %s37
      %p44 = scmp.eq.s32.totalorder %s20, 1
      %p45 = por %p43, %p44
      %p46 = scmp.ne.s32.totalorder %s37, %s38
      %p47 = scmp.eq.s32.totalorder %s20, 0
      %p48 = por %p46, %p47
      %p49 = scmp.ne.s32.totalorder %s37, %s38
      %p50 = scmp.eq.s32.totalorder %s21, 1
      %p51 = por %p49, %p50
      %p53 = scmp.ne.s32.totalorder %s38, %s52
      %p54 = scmp.eq.s32.totalorder %s21, 0
      %p55 = por %p53, %p54
      %s57 = sadd.s32 %s56, 1
      %p60 = scmp.eq.s32.totalorder %s15, 1
      %p61 = scmp.ne.s32.totalorder %s56, %s58
      %p62 = scmp.eq.s32.totalorder %s15, 0
      %p63 = por %p61, %p62
      %p64 = scmp.ne.s32.totalorder %s56, %s58
      %p65 = scmp.eq.s32.totalorder %s20, 1
      %p66 = por %p64, %p65
      %p67 = scmp.ne.s32.totalorder %s58, %s59
      %p68 = scmp.eq.s32.totalorder %s20, 0
      %p69 = por %p67, %p68
      %p70 = scmp.ne.s32.totalorder %s58, %s59
      %p71 = scmp.eq.s32.totalorder %s21, 1
      %p72 = por %p70, %p71
      %p74 = scmp.ne.s32.totalorder %s59, %s73
      %p75 = scmp.eq.s32.totalorder %s21, 0
      %p76 = por %p74, %p75
      %s77 = ssub.s32 %s22, %s34
      %p78 = scmp.eq.s32.totalorder %s77, 0
      %s80 = sadd.s32 %s79, 1
      %s81 = scalar_select %p78, %s79, %s80
      %p84 = pneg %p78
      %p85 = scmp.eq.s32.totalorder %s15, 1
      %p86 = por %p84, %p85
      %p87 = scmp.ne.s32.totalorder %s79, %s82
      %p88 = scmp.eq.s32.totalorder %s15, 0
      %p89 = por %p87, %p88
      %p90 = scmp.ne.s32.totalorder %s79, %s82
      %p91 = scmp.eq.s32.totalorder %s20, 1
      %p92 = por %p90, %p91
      %p93 = scmp.ne.s32.totalorder %s82, %s83
      %p94 = scmp.eq.s32.totalorder %s20, 0
      %p95 = por %p93, %p94
      %p96 = scmp.ne.s32.totalorder %s82, %s83
      %p97 = scmp.eq.s32.totalorder %s21, 1
      %p98 = por %p96, %p97
      %p100 = scmp.ne.s32.totalorder %s83, %s99
      %p101 = scmp.eq.s32.totalorder %s21, 0
      %p102 = por %p100, %p101
      %s103 = ssub.s32 %s22, %s34
      %s104 = ssub.s32 %s23, %s30
      %s105 = sor.u32 %s103, %s104
      %p106 = scmp.eq.s32.totalorder %s105, 0
      %s108 = sadd.s32 %s107, 1
      %s109 = scalar_select %p106, %s107, %s108
      %p112 = pneg %p106
      %p113 = scmp.eq.s32.totalorder %s15, 1
      %p114 = por %p112, %p113
      %p115 = scmp.ne.s32.totalorder %s107, %s110
      %p116 = scmp.eq.s32.totalorder %s15, 0
      %p117 = por %p115, %p116
      %p118 = scmp.ne.s32.totalorder %s107, %s110
      %p119 = scmp.eq.s32.totalorder %s20, 1
      %p120 = por %p118, %p119
      %p121 = scmp.ne.s32.totalorder %s110, %s111
      %p122 = scmp.eq.s32.totalorder %s20, 0
      %p123 = por %p121, %p122
      %p124 = scmp.ne.s32.totalorder %s110, %s111
      %p125 = scmp.eq.s32.totalorder %s21, 1
      %p126 = por %p124, %p125
      %p128 = scmp.ne.s32.totalorder %s111, %s127
      %p129 = scmp.eq.s32.totalorder %s21, 0
      %p130 = por %p128, %p129
      %p131 = scmp.le.s32.totalorder 1, %s15
      %p132 = scmp.lt.s32.totalorder %s15, 3
      %p133 = pnand %p131, %p132
      %p134 = pneg %p133
      // Predicated region
      $region9: #{tpu_custom_call.1} parent=5 // pred_check
        _
      $region10: #{tpu_custom_call.1} parent=5 // pred_check_branch
        %136 = sbr.rel (%p133) target = $region12
      $region11: #{tpu_custom_call.1} parent=5 // pred_region
        %s137 = ssub.s32 %s15, 1
        // Predicated region
        $region13: #{tpu_custom_call.1} parent=11 // pred_check
          %p138 = pneg %p48
        $region14: #{tpu_custom_call.1} parent=11 // pred_check_branch
          %140 = sbr.rel (%p138) target = $region16
        $region15: #{tpu_custom_call.1} parent=11 // pred_region
          %s142 = ssub.s32 16, 16
          %143 = vsyncadd [#allocation5], %s142
          %146 = dma.hbm_to_smem %s0, 16, [#allocation2], [#allocation5]
        $region16: #{tpu_custom_call.1} parent=11 // pred_fallthru
          _
        // Predicated region
        $region17: #{tpu_custom_call.1} parent=11 // pred_check
          %p147 = pneg %p69
        $region18: #{tpu_custom_call.1} parent=11 // pred_check_branch
          %149 = sbr.rel (%p147) target = $region20
        $region19: #{tpu_custom_call.1} parent=11 // pred_region
          %s151 = ssub.s32 32, 32
          %152 = vsyncadd [#allocation7], %s151
          %155 = dma.hbm_to_smem %s1, 32, [#allocation6], [#allocation7]
        $region20: #{tpu_custom_call.1} parent=11 // pred_fallthru
          _
        // Predicated region
        $region21: #{tpu_custom_call.1} parent=11 // pred_check
          %p156 = pneg %p95
        $region22: #{tpu_custom_call.1} parent=11 // pred_check_branch
          %158 = sbr.rel (%p156) target = $region24
        $region23: #{tpu_custom_call.1} parent=11 // pred_region
          %s160 = ssub.s32 256, 256
          %161 = vsyncadd [#allocation3], %s160
          %s162 = smul.addr %s24, 2
          %s163 = smul.addr %s162, 128
          %s164 = scalar_lea.hbm %s2, %s163
          %s166 = sshll.u32 [#allocation8], 4
          %s167 = int_to_ptr.vmem [resolvable:$true] %s166
          %169 = dma.hbm_to_vmem [thread:$0]  %s164, 256, %s167, [#allocation3]
        $region24: #{tpu_custom_call.1} parent=11 // pred_fallthru
          _
      $region12: #{tpu_custom_call.1} parent=5 // pred_fallthru
        _
      %p170 = scmp.lt.s32.totalorder %s15, 2
      // Predicated region
      $region25: #{tpu_custom_call.1} parent=5 // pred_check
        %p171 = pneg %p170
      $region26: #{tpu_custom_call.1} parent=5 // pred_check_branch
        %173 = sbr.rel (%p171) target = $region28
      $region27: #{tpu_custom_call.1} parent=5 // pred_region
        _
      $region28: #{tpu_custom_call.1} parent=5 // pred_fallthru
        _
      %p174 = scmp.le.s32.totalorder 1, %s15
      %p175 = scmp.lt.s32.totalorder %s15, 3
      %p176 = pnand %p174, %p175
      %p177 = pneg %p176
      // Predicated region
      $region29: #{tpu_custom_call.1} parent=5 // pred_check
        _
      $region30: #{tpu_custom_call.1} parent=5 // pred_check_branch
        %179 = sbr.rel (%p176) target = $region32
      $region31: #{tpu_custom_call.1} parent=5 // pred_region
        %s180 = ssub.s32 %s15, 1
        // Predicated region
        $region33: #{tpu_custom_call.1} parent=31 // pred_check
          %p181 = pneg %p48
        $region34: #{tpu_custom_call.1} parent=31 // pred_check_branch
          %183 = sbr.rel (%p181) target = $region36
        $region35: #{tpu_custom_call.1} parent=31 // pred_region
          %184 = dma.done [#allocation5], 16
        $region36: #{tpu_custom_call.1} parent=31 // pred_fallthru
          _
        // Predicated region
        $region37: #{tpu_custom_call.1} parent=31 // pred_check
          %p185 = pneg %p69
        $region38: #{tpu_custom_call.1} parent=31 // pred_check_branch
          %187 = sbr.rel (%p185) target = $region40
        $region39: #{tpu_custom_call.1} parent=31 // pred_region
          %188 = dma.done [#allocation7], 32
        $region40: #{tpu_custom_call.1} parent=31 // pred_fallthru
          _
        // Predicated region
        $region41: #{tpu_custom_call.1} parent=31 // pred_check
          %p189 = pneg %p95
        $region42: #{tpu_custom_call.1} parent=31 // pred_check_branch
          %191 = sbr.rel (%p189) target = $region44
        $region43: #{tpu_custom_call.1} parent=31 // pred_region
          %192 = dma.done [#allocation3], 256
        $region44: #{tpu_custom_call.1} parent=31 // pred_fallthru
          _
        %193 = sfence
        %p194 = pneg %p48
        %p195 = pneg %p45
        %p196 = pneg %p69
        %p197 = pneg %p66
        %p198 = pneg %p95
        %p199 = pneg %p92
        %p200 = pneg %p123
        %p201 = pneg %p120
        %s202 = sand.u32 %s110, 1
        %s203 = scalar_lea.sflag [#allocation4], %s202
        %s204 = sand.u32 %s110, 1
        %s205 = smul.addr %s204, 8
        %s206 = scalar_lea.vmem [#allocation9], %s205
        %s207 = sld [smem:[#allocation2]]
        %s208 = sld [smem:[#allocation2 + $0x1]]
        %s209 = smul.u32 %s25, 128
        %v210 = vlaneseq
        %v211 = vand.u32 %v210, 127
        %v212 = vstv %s209
        %v213 = vadd.s32 %v212, %v211
        %vm214 = vcmp.lt.s32.totalorder %v213, 255
        %v215 = vsel %vm214, %v213, 255
        %v216 = vcvt.s32.f32 %v215
        %v217 = vmul.f32 %v216, 0.0625
        %v218 = vcvt.f32.s32.to.zero.pseudo %v217
        %v219 = vmul.u32 %v218, 16
        %v220 = vsub.s32 %v215, %v219
        %vm221 = vcmp.lt.s32.totalorder %v220, 0
        %v222 = vsub.s32 %v218, 1
        %v223 = vsel %vm221, %v222, %v218
        %vm224 = vcmp.ge.s32.totalorder %v220, 16
        %v225 = vadd.s32 %v223, 1
        %v226 = vsel %vm224, %v225, %v223
        %v227 = vmul.u32 %v226, 16
        %v228 = vsub.s32 %v215, %v227
        %v229 = vcvt.s32.f32 %v228
        %v230 = vmul.f32 %v229, 2.0
        %v231 = vadd.f32 %v230, 1.0
        %v232 = vrcp.pop 16.0
        %v233 = vmul.f32 %v231, %v232
        %v234 = vsub.f32 %v233, 1.0
        %v235 = vcvt.s32.f32 %v226
        %v236 = vmul.f32 %v235, 2.0
        %v237 = vadd.f32 %v236, 1.0
        %v238 = vmul.f32 %v237, %v232
        %v239 = vsub.f32 %v238, 1.0
        %v240 = vstv %s207
        %v241 = vmul.f32 %v240, %v234
        %v242 = vstv %s208
        %v243 = vmul.f32 %v242, %v239
        %v244 = vadd.f32 %v241, %v243
        %s245 = ssub.f32 0.0, %s208
        %v246 = vstv %s245
        %v247 = vmul.f32 %v246, %v234
        %v248 = vmul.f32 %v240, %v239
        %v249 = vadd.f32 %v247, %v248
        %v250 = vadd.f32 %v244, 1.0
        %v251 = vmul.f32 %v250, 16.0
        %v252 = vsub.f32 %v251, 1.0
        %v253 = vmul.f32 %v252, 0.5
        %v254 = vadd.f32 %v249, 1.0
        %v255 = vmul.f32 %v254, 16.0
        %v256 = vsub.f32 %v255, 1.0
        %v257 = vmul.f32 %v256, 0.5
        %v258 = vfloor.f32 %v253
        %v259 = vfloor.f32 %v257
        %v260 = vsub.f32 %v253, %v258
        %v261 = vsub.f32 %v257, %v259
        %v262 = vcvt.f32.s32.to.zero.pseudo %v258
        %v263 = vcvt.f32.s32.to.zero.pseudo %v259
        %v264 = vadd.s32 %v262, 1
        %v265 = vadd.s32 %v263, 1
        %v266 = vsub.f32 1.0, %v260
        %v267 = vsub.f32 1.0, %v261
        %v268 = vmul.f32 %v266, %v267
        %vm269 = vcmp.ge.s32.totalorder %v262, 0
        %vm270 = vcmp.lt.s32.totalorder %v262, 16
        %vm271 = vmand %vm269, %vm270
        %vm272 = vcmp.ge.s32.totalorder %v263, 0
        %vm273 = vmand %vm271, %vm272
        %vm274 = vcmp.lt.s32.totalorder %v263, 16
        %vm275 = vmand %vm273, %vm274
        %v276 = vsel %vm275, %v268, 0.0
        %v277 = vmul.f32 %v260, %v267
        %vm278 = vcmp.ge.s32.totalorder %v264, 0
        %vm279 = vcmp.lt.s32.totalorder %v264, 16
        %vm280 = vmand %vm278, %vm279
        %vm281 = vmand %vm280, %vm272
        %vm282 = vmand %vm281, %vm274
        %v283 = vsel %vm282, %v277, 0.0
        %v284 = vmul.f32 %v266, %v261
        %vm285 = vcmp.ge.s32.totalorder %v265, 0
        %vm286 = vmand %vm271, %vm285
        %vm287 = vcmp.lt.s32.totalorder %v265, 16
        %vm288 = vmand %vm286, %vm287
        %v289 = vsel %vm288, %v284, 0.0
        %v290 = vmul.f32 %v260, %v261
        %vm291 = vmand %vm280, %vm285
        %vm292 = vmand %vm291, %vm287
        %v293 = vsel %vm292, %v290, 0.0
        %v294 = vmul.u32 %v263, 16
        %v295 = vadd.s32 %v294, %v262
        %v296 = vlaneseq
        %v297 = vshrl.u32 %v296, 7
        %v298 = vadd.s32 %v297, 8
        %v299 = vadd.s32 %v297, 16
        %v300 = vadd.s32 %v297, 24
        %v301 = vadd.s32 %v297, 32
        %v302 = vadd.s32 %v297, 40
        %v303 = vadd.s32 %v297, 48
        %v304 = vadd.s32 %v297, 56
        %v305 = vadd.s32 %v297, 64
        %v306 = vadd.s32 %v297, 72
        %v307 = vadd.s32 %v297, 80
        %v308 = vadd.s32 %v297, 88
        %v309 = vadd.s32 %v297, 96
        %v310 = vadd.s32 %v297, 104
        %v311 = vadd.s32 %v297, 112
        %v312 = vadd.s32 %v297, 120
        %v313 = vsub.s32 %v297, %v295
        %v314 = vsub.s32 %v298, %v295
        %v315 = vsub.s32 %v299, %v295
        %v316 = vsub.s32 %v300, %v295
        %v317 = vsub.s32 %v301, %v295
        %v318 = vsub.s32 %v302, %v295
        %v319 = vsub.s32 %v303, %v295
        %v320 = vsub.s32 %v304, %v295
        %v321 = vsub.s32 %v305, %v295
        %v322 = vsub.s32 %v306, %v295
        %v323 = vsub.s32 %v307, %v295
        %v324 = vsub.s32 %v308, %v295
        %v325 = vsub.s32 %v309, %v295
        %v326 = vsub.s32 %v310, %v295
        %v327 = vsub.s32 %v311, %v295
        %v328 = vsub.s32 %v312, %v295
        %329 = vst [vmem:[%s206] sm:$0xff] 0.0
        %s330 = sld [smem:[#allocation6 + %s25]]
        %s331 = sshra.s32 %s25, 7
        %s332 = sand.u32 %s25, 127
        %s333 = sadd.s32 %s331, 1
        %s334 = smul.u32 %s333, 128
        %s335 = sshra.s32 %s25, 7
        %s336 = sand.u32 %s25, 127
        %s337 = sadd.s32 %s334, %s336
        %s338 = sld [smem:[#allocation6 + %s337]]
        %s339 = sadd.s32 %s338, 1
        // While loop
        $region45: #{tpu_custom_call.1} parent=31 // loop_pre_header
          _
        $region46: #{tpu_custom_call.1} parent=31 // loop_header
          %s341 = sphi %s330, %s343
          %p342 = scmp.ge.s32.totalorder %s341, %s339
        $region47: #{tpu_custom_call.1} parent=31 // loop_header_branch
          %345 = sbr.rel (%p342) target = $region51
        $region48: #{tpu_custom_call.1} parent=31 // loop_body
          %s346 = smul.u32 %s341, 128
          %s347 = ssub.s32 0, %s346
          %v348 = vstv %s347
          %vm349 = vcmp.eq.s32.totalorder %v313, %v348
          %vm350 = vcmp.eq.s32.totalorder %v314, %v348
          %vm351 = vcmp.eq.s32.totalorder %v315, %v348
          %vm352 = vcmp.eq.s32.totalorder %v316, %v348
          %vm353 = vcmp.eq.s32.totalorder %v317, %v348
          %vm354 = vcmp.eq.s32.totalorder %v318, %v348
          %vm355 = vcmp.eq.s32.totalorder %v319, %v348
          %vm356 = vcmp.eq.s32.totalorder %v320, %v348
          %vm357 = vcmp.eq.s32.totalorder %v321, %v348
          %vm358 = vcmp.eq.s32.totalorder %v322, %v348
          %vm359 = vcmp.eq.s32.totalorder %v323, %v348
          %vm360 = vcmp.eq.s32.totalorder %v324, %v348
          %vm361 = vcmp.eq.s32.totalorder %v325, %v348
          %vm362 = vcmp.eq.s32.totalorder %v326, %v348
          %vm363 = vcmp.eq.s32.totalorder %v327, %v348
          %vm364 = vcmp.eq.s32.totalorder %v328, %v348
          %s365 = ssub.s32 1, %s346
          %v366 = vstv %s365
          %vm367 = vcmp.eq.s32.totalorder %v313, %v366
          %vm368 = vcmp.eq.s32.totalorder %v314, %v366
          %vm369 = vcmp.eq.s32.totalorder %v315, %v366
          %vm370 = vcmp.eq.s32.totalorder %v316, %v366
          %vm371 = vcmp.eq.s32.totalorder %v317, %v366
          %vm372 = vcmp.eq.s32.totalorder %v318, %v366
          %vm373 = vcmp.eq.s32.totalorder %v319, %v366
          %vm374 = vcmp.eq.s32.totalorder %v320, %v366
          %vm375 = vcmp.eq.s32.totalorder %v321, %v366
          %vm376 = vcmp.eq.s32.totalorder %v322, %v366
          %vm377 = vcmp.eq.s32.totalorder %v323, %v366
          %vm378 = vcmp.eq.s32.totalorder %v324, %v366
          %vm379 = vcmp.eq.s32.totalorder %v325, %v366
          %vm380 = vcmp.eq.s32.totalorder %v326, %v366
          %vm381 = vcmp.eq.s32.totalorder %v327, %v366
          %vm382 = vcmp.eq.s32.totalorder %v328, %v366
          %s383 = ssub.s32 16, %s346
          %v384 = vstv %s383
          %vm385 = vcmp.eq.s32.totalorder %v313, %v384
          %vm386 = vcmp.eq.s32.totalorder %v314, %v384
          %vm387 = vcmp.eq.s32.totalorder %v315, %v384
          %vm388 = vcmp.eq.s32.totalorder %v316, %v384
          %vm389 = vcmp.eq.s32.totalorder %v317, %v384
          %vm390 = vcmp.eq.s32.totalorder %v318, %v384
          %vm391 = vcmp.eq.s32.totalorder %v319, %v384
          %vm392 = vcmp.eq.s32.totalorder %v320, %v384
          %vm393 = vcmp.eq.s32.totalorder %v321, %v384
          %vm394 = vcmp.eq.s32.totalorder %v322, %v384
          %vm395 = vcmp.eq.s32.totalorder %v323, %v384
          %vm396 = vcmp.eq.s32.totalorder %v324, %v384
          %vm397 = vcmp.eq.s32.totalorder %v325, %v384
          %vm398 = vcmp.eq.s32.totalorder %v326, %v384
          %vm399 = vcmp.eq.s32.totalorder %v327, %v384
          %vm400 = vcmp.eq.s32.totalorder %v328, %v384
          %s401 = ssub.s32 17, %s346
          %v402 = vstv %s401
          %vm403 = vcmp.eq.s32.totalorder %v313, %v402
          %vm404 = vcmp.eq.s32.totalorder %v314, %v402
          %vm405 = vcmp.eq.s32.totalorder %v315, %v402
          %vm406 = vcmp.eq.s32.totalorder %v316, %v402
          %vm407 = vcmp.eq.s32.totalorder %v317, %v402
          %vm408 = vcmp.eq.s32.totalorder %v318, %v402
          %vm409 = vcmp.eq.s32.totalorder %v319, %v402
          %vm410 = vcmp.eq.s32.totalorder %v320, %v402
          %vm411 = vcmp.eq.s32.totalorder %v321, %v402
          %vm412 = vcmp.eq.s32.totalorder %v322, %v402
          %vm413 = vcmp.eq.s32.totalorder %v323, %v402
          %vm414 = vcmp.eq.s32.totalorder %v324, %v402
          %vm415 = vcmp.eq.s32.totalorder %v325, %v402
          %vm416 = vcmp.eq.s32.totalorder %v326, %v402
          %vm417 = vcmp.eq.s32.totalorder %v327, %v402
          %vm418 = vcmp.eq.s32.totalorder %v328, %v402
          %v419 = vsel %vm403, %v293, 0.0
          %v420 = vsel %vm404, %v293, 0.0
          %v421 = vsel %vm405, %v293, 0.0
          %v422 = vsel %vm406, %v293, 0.0
          %v423 = vsel %vm407, %v293, 0.0
          %v424 = vsel %vm408, %v293, 0.0
          %v425 = vsel %vm409, %v293, 0.0
          %v426 = vsel %vm410, %v293, 0.0
          %v427 = vsel %vm411, %v293, 0.0
          %v428 = vsel %vm412, %v293, 0.0
          %v429 = vsel %vm413, %v293, 0.0
          %v430 = vsel %vm414, %v293, 0.0
          %v431 = vsel %vm415, %v293, 0.0
          %v432 = vsel %vm416, %v293, 0.0
          %v433 = vsel %vm417, %v293, 0.0
          %v434 = vsel %vm418, %v293, 0.0
          %v435 = vsel %vm385, %v289, %v419
          %v436 = vsel %vm386, %v289, %v420
          %v437 = vsel %vm387, %v289, %v421
          %v438 = vsel %vm388, %v289, %v422
          %v439 = vsel %vm389, %v289, %v423
          %v440 = vsel %vm390, %v289, %v424
          %v441 = vsel %vm391, %v289, %v425
          %v442 = vsel %vm392, %v289, %v426
          %v443 = vsel %vm393, %v289, %v427
          %v444 = vsel %vm394, %v289, %v428
          %v445 = vsel %vm395, %v289, %v429
          %v446 = vsel %vm396, %v289, %v430
          %v447 = vsel %vm397, %v289, %v431
          %v448 = vsel %vm398, %v289, %v432
          %v449 = vsel %vm399, %v289, %v433
          %v450 = vsel %vm400, %v289, %v434
          %v451 = vsel %vm367, %v283, %v435
          %v452 = vsel %vm368, %v283, %v436
          %v453 = vsel %vm369, %v283, %v437
          %v454 = vsel %vm370, %v283, %v438
          %v455 = vsel %vm371, %v283, %v439
          %v456 = vsel %vm372, %v283, %v440
          %v457 = vsel %vm373, %v283, %v441
          %v458 = vsel %vm374, %v283, %v442
          %v459 = vsel %vm375, %v283, %v443
          %v460 = vsel %vm376, %v283, %v444
          %v461 = vsel %vm377, %v283, %v445
          %v462 = vsel %vm378, %v283, %v446
          %v463 = vsel %vm379, %v283, %v447
          %v464 = vsel %vm380, %v283, %v448
          %v465 = vsel %vm381, %v283, %v449
          %v466 = vsel %vm382, %v283, %v450
          %v467 = vsel %vm349, %v276, %v451
          %v468 = vsel %vm350, %v276, %v452
          %v469 = vsel %vm351, %v276, %v453
          %v470 = vsel %vm352, %v276, %v454
          %v471 = vsel %vm353, %v276, %v455
          %v472 = vsel %vm354, %v276, %v456
          %v473 = vsel %vm355, %v276, %v457
          %v474 = vsel %vm356, %v276, %v458
          %v475 = vsel %vm357, %v276, %v459
          %v476 = vsel %vm358, %v276, %v460
          %v477 = vsel %vm359, %v276, %v461
          %v478 = vsel %vm360, %v276, %v462
          %v479 = vsel %vm361, %v276, %v463
          %v480 = vsel %vm362, %v276, %v464
          %v481 = vsel %vm363, %v276, %v465
          %v482 = vsel %vm364, %v276, %v466
          %s483 = sshra.s32 %s346, 7
          %s484 = sand.u32 %s346, 127
          %s485 = smul.addr %s483, 8
          %s486 = scalar_lea.vmem [#allocation8], %s485
          %v487 = vld [vmem:[%s486] sm:$0xff]
          %v488 = vld [vmem:[%s206] sm:$0xff]
          %489 = vmatprep.subr.mxu0 0.0
          %490 = vmatpush1.msra.mxu0 %v482
          %491 = vmatprep.subr.mxu0 0.0
          %492 = vmatpush1.msra.mxu0 %v481
          %493 = vmatprep.subr.mxu0 0.0
          %494 = vmatpush1.msra.mxu0 %v480
          %495 = vmatprep.subr.mxu0 0.0
          %496 = vmatpush1.msra.mxu0 %v479
          %497 = vmatprep.subr.mxu0 0.0
          %498 = vmatpush1.msra.mxu0 %v478
          %499 = vmatprep.subr.mxu0 0.0
          %500 = vmatpush1.msra.mxu0 %v477
          %501 = vmatprep.subr.mxu0 0.0
          %502 = vmatpush1.msra.mxu0 %v476
          %503 = vmatprep.subr.mxu0 0.0
          %504 = vmatpush1.msra.mxu0 %v475
          %505 = vmatprep.subr.mxu0 0.0
          %506 = vmatpush1.msra.mxu0 %v474
          %507 = vmatprep.subr.mxu0 0.0
          %508 = vmatpush1.msra.mxu0 %v473
          %509 = vmatprep.subr.mxu0 0.0
          %510 = vmatpush1.msra.mxu0 %v472
          %511 = vmatprep.subr.mxu0 0.0
          %512 = vmatpush1.msra.mxu0 %v471
          %513 = vmatprep.subr.mxu0 0.0
          %514 = vmatpush1.msra.mxu0 %v470
          %515 = vmatprep.subr.mxu0 0.0
          %516 = vmatpush1.msra.mxu0 %v469
          %517 = vmatprep.subr.mxu0 0.0
          %518 = vmatpush1.msra.mxu0 %v468
          %519 = vmatprep.subr.mxu0 0.0
          %520 = vmatpush1.msra.mxu0 %v467
          %521 = vmatprep.subr.mxu0 0.0
          %522 = vmatpush2.msra.mxu0 0.0
          %523 = vmatprep.subr.mxu0 0.0
          %524 = vmatpush2.msra.mxu0 0.0
          %525 = vmatprep.subr.mxu0 0.0
          %526 = vmatpush2.msra.mxu0 0.0
          %527 = vmatprep.subr.mxu0 0.0
          %528 = vmatpush2.msra.mxu0 0.0
          %529 = vmatprep.subr.mxu0 0.0
          %530 = vmatpush2.msra.mxu0 0.0
          %531 = vmatprep.subr.mxu0 0.0
          %532 = vmatpush2.msra.mxu0 0.0
          %533 = vmatprep.subr.mxu0 0.0
          %534 = vmatpush2.msra.mxu0 0.0
          %535 = vmatprep.subr.mxu0 0.0
          %536 = vmatpush2.msra.mxu0 0.0
          %537 = vmatprep.subr.mxu0 0.0
          %538 = vmatpush2.msra.mxu0 0.0
          %539 = vmatprep.subr.mxu0 0.0
          %540 = vmatpush2.msra.mxu0 0.0
          %541 = vmatprep.subr.mxu0 0.0
          %542 = vmatpush2.msra.mxu0 0.0
          %543 = vmatprep.subr.mxu0 0.0
          %544 = vmatpush2.msra.mxu0 0.0
          %545 = vmatprep.subr.mxu0 0.0
          %546 = vmatpush2.msra.mxu0 0.0
          %547 = vmatprep.subr.mxu0 0.0
          %548 = vmatpush2.msra.mxu0 0.0
          %549 = vmatprep.subr.mxu0 0.0
          %550 = vmatpush2.msra.mxu0 0.0
          %551 = vmatprep.subr.mxu0 0.0
          %552 = vmatpush2.msra.mxu0 0.0
          %553 = vmatprep.mubr.f32.mxu0 0.0
          %554 = vmatmul.mubr.f32.gmra.mxu0 %v487
          %v555 = vpop.f32.mrf.mxu0
          %v556 = vadd.f32 0.0, %v555
          %v557 = vpop.f32.mrf.mxu0
          %558 = vdwg.mxu0
          %v559 = vadd.f32 %v488, %v556
          %560 = vst [vmem:[%s206] sm:$0xff] %v559
        $region49: #{tpu_custom_call.1} parent=31 // loop_footer
          %s343 = sadd.s32 %s341, 1
        $region50: #{tpu_custom_call.1} parent=31 // loop_footer_branch
          %340 = sbr.rel target = $region46
        $region51: #{tpu_custom_call.1} parent=31 // loop_exit
          _
        %s561 = sand.u32 %s110, 1
        %s562 = scalar_lea.sflag [#allocation4], %s561
        %s563 = sand.u32 %s110, 1
        %s564 = smul.addr %s563, 8
        %s565 = scalar_lea.vmem [#allocation9], %s564
        // Predicated region
        $region52: #{tpu_custom_call.1} parent=31 // pred_check
          %p566 = pneg %p120
        $region53: #{tpu_custom_call.1} parent=31 // pred_check_branch
          %568 = sbr.rel (%p566) target = $region55
        $region54: #{tpu_custom_call.1} parent=31 // pred_region
          %s570 = ssub.s32 128, 128
          %571 = vsyncadd %s562, %s570
          %s572 = smul.addr %s24, 2
          %s573 = sadd.s32 %s25, %s572
          %s574 = smul.addr %s573, 128
          %s575 = scalar_lea.hbm %s3, %s574
          %s577 = sshll.u32 %s565, 4
          %s578 = int_to_ptr.vmem [resolvable:$true] %s577
          %580 = dma.vmem_to_hbm [thread:$0]  %s578, 128, %s575, %s562
        $region55: #{tpu_custom_call.1} parent=31 // pred_fallthru
          _
      $region32: #{tpu_custom_call.1} parent=5 // pred_fallthru
        _
      %p581 = scmp.le.s32.totalorder 2, %s15
      // Predicated region
      $region56: #{tpu_custom_call.1} parent=5 // pred_check
        %p582 = pneg %p581
      $region57: #{tpu_custom_call.1} parent=5 // pred_check_branch
        %584 = sbr.rel (%p582) target = $region59
      $region58: #{tpu_custom_call.1} parent=5 // pred_region
        %s585 = ssub.s32 %s15, 2
        // Predicated region
        $region60: #{tpu_custom_call.1} parent=58 // pred_check
          %p586 = pneg %p126
        $region61: #{tpu_custom_call.1} parent=58 // pred_check_branch
          %588 = sbr.rel (%p586) target = $region63
        $region62: #{tpu_custom_call.1} parent=58 // pred_region
          %s589 = sand.u32 %s111, 1
          %s590 = scalar_lea.sflag [#allocation4], %s589
          %s591 = sand.u32 %s111, 1
          %s592 = smul.addr %s591, 8
          %s593 = scalar_lea.vmem [#allocation9], %s592
          %594 = dma.done %s590, 128
        $region63: #{tpu_custom_call.1} parent=58 // pred_fallthru
          _
      $region59: #{tpu_custom_call.1} parent=5 // pred_fallthru
        _
    $region6: #{tpu_custom_call.1} parent=1 // loop_footer
      %s19 = sadd.s32 1, %s15
    $region7: #{tpu_custom_call.1} parent=1 // loop_footer_branch
      %14 = sbr.rel target = $region3
    $region8: #{tpu_custom_call.1} parent=1 // loop_exit
      _
    %595 = vsyncpa [#allocation3], 1
    %s596 = scalar_lea.sflag [#allocation3], 1
    %597 = vsyncpa %s596, 1
    %598 = vsyncpa [#allocation4], 1
    %s599 = scalar_lea.sflag [#allocation4], 1
    %600 = vsyncpa %s599, 1
    %601 = vsyncpa [#allocation5], 1
    %s602 = scalar_lea.sflag [#allocation5], 1
    %603 = vsyncpa %s602, 1
    %604 = vsyncpa [#allocation7], 1

</llo_original>
